<compile_context>
chip_gen: v7x
topology: tpu7x:2x2x1
jax: 0.10.0
libtpu: 0.0.40
codegen_flags: <defaults>
</compile_context>

<pallas_src>
import jax
import jax.numpy as jnp
from jax.experimental import pallas as pl
from jax.experimental.pallas import tpu as pltpu


def _pool_kernel(last_pos_ref,   # SMEM [B] int32            (scalar prefetch)
                 mask_ref,       # VMEM [tS, 1] f32          attention-mask column
                 hs_ref,         # VMEM [tS, H] native dtype hidden-state tile
                 out_ref):       # VMEM [2, H]  f32          row0 = masked sum, row1 = last token
    b = pl.program_id(0)
    c = pl.program_id(1)          # sequence-split (megacore) index
    s = pl.program_id(2)          # sequence-tile index within the split
    nsps = pl.num_programs(2)
    tS = hs_ref.shape[0]

    @pl.when(s == 0)
    def _init():
        out_ref[...] = jnp.zeros_like(out_ref)

    # Masked partial sum, VPU only (cast + multiply + vreg adds + one small
    # cross-sublane reduce on the XLU slot); the MXU never touches the
    # streamed activations, so the kernel stays memory-bound.
    x = hs_ref[...].astype(jnp.float32) * mask_ref[...]
    out_ref[0:1, :] += jnp.sum(x, axis=0, keepdims=True)

    # Last-token gather: exactly one (c, s) tile per batch row contains it,
    # so the guarded dynamic row slice costs ~nothing overall.
    local = last_pos_ref[b] - (c * nsps + s) * tS

    @pl.when((local >= 0) & (local < tS))
    def _gather():
        out_ref[1:2, :] = hs_ref[pl.ds(local, 1), :].astype(jnp.float32)


def _round_up(x, m):
    return -(-x // m) * m


def _vmem_capacity_bytes(default=64 << 20):
    """Per-core VMEM capacity; conservative (v7x-sized) default if the query fails."""
    try:
        cap = getattr(pltpu.get_tpu_info(), "vmem_capacity_bytes", None)
        return int(cap) if cap else default
    except Exception:
        return default


def _choose_seq_tile(S, H, itemsize, budget_bytes, max_tile):
    """Largest seq tile (multiple of 8, <= max_tile) such that the
    double-buffered hs/mask blocks plus f32 temporaries fit the VMEM budget.
    Returns (tile, padded_S, num_tiles)."""
    H_pad = _round_up(H, 128)
    per_pos = 2 * H_pad * itemsize       # hs tile, double-buffered
    per_pos += 2 * 512                   # [tS,1] f32 mask column (lane-padded), x2
    per_pos += 4 * H_pad                 # f32 temporary for the masked reduce
    fixed = 32 * H_pad * 4 + (1 << 20)   # output blocks + slack
    cap = max(8, (budget_bytes - fixed) // per_pos)
    cap = max(8, (int(min(cap, max_tile)) // 8) * 8)
    S8 = _round_up(S, 8)
    if S8 <= cap:
        return S8, S8, 1
    num_s = -(-S // cap)                           # ceil
    tile = _round_up(-(-S // num_s), 8)            # minimise padding
    return tile, num_s * tile, num_s


def toxicity_probe_forward(hidden_states, attention_mask, params, *,
                           block_seq=2048, seq_splits=None):
    """hidden_states: [B, S, H] (any float dtype); attention_mask: [B, S]."""
    B, S, H = hidden_states.shape
    hs = hidden_states                        # streamed in native dtype
    itemsize = jnp.dtype(hs.dtype).itemsize

    vmem_cap = _vmem_capacity_bytes()
    max_tile = max(8, _round_up(int(block_seq), 8))
    tS, S_pad, num_s = _choose_seq_tile(S, H, itemsize,
                                        int(vmem_cap * 0.6), max_tile)

    # Sequence-split axis: keeps both v7x TensorCores busy when the batch
    # alone cannot (B == 1); partials are combined in XLA below.
    if seq_splits is None:
        seq_splits = 2 if (B == 1 and num_s >= 2 and num_s % 2 == 0) else 1
    n_split = seq_splits if (seq_splits >= 1 and num_s % seq_splits == 0) else 1
    nsps = num_s // n_split

    # Tiny [B, S] preprocessing in XLA: token counts, last valid position
    # (wrapped mod S so an all-zero mask gathers row S-1, matching PyTorch's
    # hidden_states[arange(B), -1] behaviour), and the f32 mask column.
    counts = jnp.sum(attention_mask.astype(jnp.int32), axis=1)        # [B]
    last_pos = jnp.mod(counts - 1, S).astype(jnp.int32)               # [B]
    mask_col = attention_mask.astype(jnp.float32)[:, :, None]         # [B, S, 1]

    if S_pad != S:   # zero-pad: padded rows are zero hs x zero mask -> no effect
        hs = jnp.pad(hs, ((0, 0), (0, S_pad - S), (0, 0)))
        mask_col = jnp.pad(mask_col, ((0, 0), (0, S_pad - S), (0, 0)))

    # VMEM limit from the actual footprint, clamped to 85% of capacity.
    H_pad = _round_up(H, 128)
    sub = 8 * max(1, 4 // itemsize)
    hs_blk = _round_up(tS, sub) * H_pad * itemsize
    mask_blk = _round_up(tS, 8) * 128 * 4
    out_blk = 8 * H_pad * 4
    temps = 2 * tS * H_pad * 4
    need = 2 * (hs_blk + mask_blk) + 2 * out_blk + temps + (2 << 20)
    vmem_limit = int(min(int(vmem_cap * 0.85), max(need, 32 << 20)))

    grid_spec = pltpu.PrefetchScalarGridSpec(
        num_scalar_prefetch=1,
        grid=(B, n_split, nsps),
        in_specs=[
            pl.BlockSpec((None, tS, 1), lambda b, c, s, lp: (b, c * nsps + s, 0)),
            pl.BlockSpec((None, tS, H), lambda b, c, s, lp: (b, c * nsps + s, 0)),
        ],
        out_specs=pl.BlockSpec((None, None, 2, H),
                               lambda b, c, s, lp: (b, c, 0, 0)),
    )

    pooled = pl.pallas_call(
        _pool_kernel,
        out_shape=jax.ShapeDtypeStruct((B, n_split, 2, H), jnp.float32),
        grid_spec=grid_spec,
        compiler_params=pltpu.CompilerParams(
            dimension_semantics=("parallel", "parallel", "arbitrary"),
            vmem_limit_bytes=vmem_limit),
    )(last_pos, mask_col, hs)

    # Combine seq-split partials and run the tiny classifier head in XLA,
    # keeping the exact reference op order (no weight folding).
    pooled = jnp.sum(pooled, axis=1)                          # [B, 2, H]
    sum_hidden = pooled[:, 0, :]
    last_hidden = pooled[:, 1, :]
    # NOTE: all-zero mask -> division by zero -> NaN, matching the reference.
    avg = sum_hidden / counts.astype(jnp.float32)[:, None]
    combined = jnp.concatenate([avg, last_hidden], axis=1)    # [B, 2H]
    hidden = combined @ params["w1"].T + params["b1"]
    return hidden @ params["w2"].T + params["b2"]


def init_params(key, hidden_size):
    """Deterministic synthetic parameters matching the nn.Linear shapes."""
    k1, k2, k3, k4 = jax.random.split(key, 4)
    bound1 = 1.0 / jnp.sqrt(2.0 * hidden_size)
    bound2 = 1.0 / jnp.sqrt(1.0 * hidden_size)
    return {
        # nn.Linear(hidden_size*2, hidden_size): weight [H, 2H], bias [H]
        "w1": jax.random.uniform(k1, (hidden_size, 2 * hidden_size),
                                 jnp.float32, -bound1, bound1),
        "b1": jax.random.uniform(k2, (hidden_size,), jnp.float32, -bound1, bound1),
        # nn.Linear(hidden_size, 2): weight [2, H], bias [2]
        "w2": jax.random.uniform(k3, (2, hidden_size), jnp.float32, -bound2, bound2),
        "b2": jax.random.uniform(k4, (2,), jnp.float32, -bound2, bound2),
    }


def _reference_forward(hidden_states, attention_mask, params):
    """Pure-JAX reference replicating the PyTorch forward exactly."""
    hs = hidden_states.astype(jnp.float32)
    mask = attention_mask.astype(jnp.float32)
    B = hs.shape[0]
    last_pos = jnp.sum(attention_mask.astype(jnp.int32), axis=1) - 1
    last_hidden = hs[jnp.arange(B), last_pos]
    masked = hs * mask[:, :, None]
    avg = masked.sum(axis=1) / mask.sum(axis=1, keepdims=True)
    combined = jnp.concatenate([avg, last_hidden], axis=1)
    hidden = combined @ params["w1"].T + params["b1"]
    return hidden @ params["w2"].T + params["b2"]


if __name__ == "__main__":
    key = jax.random.PRNGKey(0)

    def _run_case(B, S, H, **kw):
        ks = jax.random.fold_in(key, B * 10000 + S * 100 + H)
        k_hs, k_len, k_par = jax.random.split(ks, 3)
        hidden_states = jax.random.normal(k_hs, (B, S, H), dtype=jnp.float32)
        lengths = jax.random.randint(k_len, (B,), 1, S + 1)
        attention_mask = (jnp.arange(S)[None, :] < lengths[:, None]).astype(jnp.int32)
        params = init_params(k_par, H)

        logits = toxicity_probe_forward(hidden_states, attention_mask, params, **kw)
        jax.block_until_ready(logits)

        ref = _reference_forward(hidden_states, attention_mask, params)
        assert logits.shape == (B, 2)
        err = jnp.max(jnp.abs(logits - ref))
        assert jnp.allclose(logits, ref, atol=1e-4, rtol=1e-4), f"max abs err {err}"
        return logits

    # Primary small case (module shapes scaled down).
    _run_case(2, 8, 32)
    # Ragged S and non-multiple-of-128 H (exercises sequence zero-padding).
    _run_case(3, 13, 160)
    # B == 1 with forced tiny tiles (exercises the seq-split / megacore path).
    _run_case(1, 32, 64, block_seq=8)

    print("KERNEL_OK")
</pallas_src>

<mosaic_0001>
module attributes {stable_mosaic.version = 11 : i64} {
  func.func @_pool_kernel(%arg0: i32, %arg1: i32, %arg2: i32, %arg3: memref<2xi32, #tpu.memory_space<smem>>, %arg4: memref<1x8x1xf32, #tpu.memory_space<vmem>>, %arg5: memref<1x8x32xf32, #tpu.memory_space<vmem>>, %arg6: memref<1x1x2x32xf32, #tpu.memory_space<vmem>>) attributes {dimension_semantics = [#tpu.dimension_semantics<parallel>, #tpu.dimension_semantics<parallel>, #tpu.dimension_semantics<arbitrary>], iteration_bounds = array<i64: 2, 1, 1>, scalar_prefetch = 1 : i64, scratch_operands = 0 : i64, tpu.core_type = #tpu.core_type<tc>, window_params = [{transform_indices = @transform_0, window_bounds = array<i64: 1, 8, 1>}, {transform_indices = @transform_1, window_bounds = array<i64: 1, 8, 32>}, {transform_indices = @transform_2, window_bounds = array<i64: 1, 1, 2, 32>}]} {
    %c0_i32 = arith.constant 0 : i32
    %0 = arith.cmpi eq, %arg2, %c0_i32 : i32
    %1 = arith.extui %0 : i1 to i32
    %c0_i32_0 = arith.constant 0 : i32
    %2 = arith.cmpi ne, %1, %c0_i32_0 : i32
    scf.if %2 {
      %cst_17 = arith.constant 0.000000e+00 : f32
      %28 = vector.broadcast %cst_17 : f32 to vector<2x32xf32>
      %c0_18 = arith.constant 0 : index
      %c0_19 = arith.constant 0 : index
      %c0_20 = arith.constant 0 : index
      %c0_21 = arith.constant 0 : index
      %29 = vector.load %arg6[%c0_18, %c0_19, %c0_20, %c0_21] : memref<1x1x2x32xf32, #tpu.memory_space<vmem>>, vector<1x1x2x32xf32>
      %30 = vector.shape_cast %29 : vector<1x1x2x32xf32> to vector<2x32xf32>
      %31 = vector.shape_cast %28 : vector<2x32xf32> to vector<1x1x2x32xf32>
      tpu.vector_store %arg6[%c0_18, %c0_19, %c0_20, %c0_21], %31 {strides = array<i32>} : memref<1x1x2x32xf32, #tpu.memory_space<vmem>>, vector<1x1x2x32xf32>,
    } else {
    }
    %c0 = arith.constant 0 : index
    %c0_1 = arith.constant 0 : index
    %c0_2 = arith.constant 0 : index
    %3 = vector.load %arg5[%c0, %c0_1, %c0_2] : memref<1x8x32xf32, #tpu.memory_space<vmem>>, vector<1x8x32xf32>
    %4 = vector.shape_cast %3 : vector<1x8x32xf32> to vector<8x32xf32>
    %c0_3 = arith.constant 0 : index
    %c0_4 = arith.constant 0 : index
    %c0_5 = arith.constant 0 : index
    %5 = vector.load %arg4[%c0_3, %c0_4, %c0_5] : memref<1x8x1xf32, #tpu.memory_space<vmem>>, vector<1x8x1xf32>
    %6 = vector.shape_cast %5 : vector<1x8x1xf32> to vector<8x1xf32>
    %7 = vector.broadcast %6 : vector<8x1xf32> to vector<8x32xf32>
    %8 = arith.mulf %4, %7 : vector<8x32xf32>
    %c0_6 = arith.constant 0 : index
    %c0_7 = arith.constant 0 : index
    %c0_8 = arith.constant 0 : index
    %c0_9 = arith.constant 0 : index
    %9 = vector.load %arg6[%c0_6, %c0_7, %c0_8, %c0_9] : memref<1x1x2x32xf32, #tpu.memory_space<vmem>>, vector<1x1x1x32xf32>
    %10 = vector.shape_cast %9 : vector<1x1x1x32xf32> to vector<1x32xf32>
    %cst = arith.constant dense<0.000000e+00> : vector<32xf32>
    %11 = vector.multi_reduction <add>, %8, %cst [0] : vector<8x32xf32> to vector<32xf32>
    %12 = vector.shape_cast %11 : vector<32xf32> to vector<1x32xf32>
    %13 = arith.addf %10, %12 : vector<1x32xf32>
    %c0_10 = arith.constant 0 : index
    %c0_11 = arith.constant 0 : index
    %c0_12 = arith.constant 0 : index
    %c0_13 = arith.constant 0 : index
    %14 = vector.load %arg6[%c0_10, %c0_11, %c0_12, %c0_13] : memref<1x1x2x32xf32, #tpu.memory_space<vmem>>, vector<1x1x1x32xf32>
    %15 = vector.shape_cast %14 : vector<1x1x1x32xf32> to vector<1x32xf32>
    %16 = vector.shape_cast %13 : vector<1x32xf32> to vector<1x1x1x32xf32>
    tpu.vector_store %arg6[%c0_10, %c0_11, %c0_12, %c0_13], %16 {strides = array<i32>} : memref<1x1x2x32xf32, #tpu.memory_space<vmem>>, vector<1x1x1x32xf32>,
    %17 = arith.index_cast %arg0 : i32 to index
    %18 = memref.load %arg3[%17] : memref<2xi32, #tpu.memory_space<smem>>
    %c1_i32 = arith.constant 1 : i32
    %19 = arith.muli %arg1, %c1_i32 : i32
    %20 = arith.addi %19, %arg2 : i32
    %c8_i32 = arith.constant 8 : i32
    %21 = arith.muli %20, %c8_i32 : i32
    %22 = arith.subi %18, %21 : i32
    %c0_i32_14 = arith.constant 0 : i32
    %23 = arith.cmpi sge, %22, %c0_i32_14 : i32
    %c8_i32_15 = arith.constant 8 : i32
    %24 = arith.cmpi slt, %22, %c8_i32_15 : i32
    %25 = arith.andi %23, %24 : i1
    %26 = arith.extui %25 : i1 to i32
    %c0_i32_16 = arith.constant 0 : i32
    %27 = arith.cmpi ne, %26, %c0_i32_16 : i32
    scf.if %27 {
      %c0_17 = arith.constant 0 : index
      %28 = arith.index_cast %22 : i32 to index
      %c0_18 = arith.constant 0 : index
      %29 = vector.load %arg5[%c0_17, %28, %c0_18] : memref<1x8x32xf32, #tpu.memory_space<vmem>>, vector<1x1x32xf32>
      %30 = vector.shape_cast %29 : vector<1x1x32xf32> to vector<1x32xf32>
      %c0_19 = arith.constant 0 : index
      %c0_20 = arith.constant 0 : index
      %c1 = arith.constant 1 : index
      %c0_21 = arith.constant 0 : index
      %31 = vector.load %arg6[%c0_19, %c0_20, %c1, %c0_21] : memref<1x1x2x32xf32, #tpu.memory_space<vmem>>, vector<1x1x1x32xf32>
      %32 = vector.shape_cast %31 : vector<1x1x1x32xf32> to vector<1x32xf32>
      %33 = vector.shape_cast %30 : vector<1x32xf32> to vector<1x1x1x32xf32>
      tpu.vector_store %arg6[%c0_19, %c0_20, %c1, %c0_21], %33 {strides = array<i32>} : memref<1x1x2x32xf32, #tpu.memory_space<vmem>>, vector<1x1x1x32xf32>,
    } else {
    }
    return
  }
  func.func @transform_0(%arg0: i32, %arg1: i32, %arg2: i32, %arg3: memref<2xi32, #tpu.memory_space<smem>>) -> (i32, i32, i32) {
    %c1_i32 = arith.constant 1 : i32
    %0 = arith.muli %arg1, %c1_i32 : i32
    %1 = arith.addi %0, %arg2 : i32
    %c0_i32 = arith.constant 0 : i32
    %c0_i32_0 = arith.constant 0 : i32
    return %arg0, %1, %c0_i32 : i32, i32, i32
  }
  func.func @transform_1(%arg0: i32, %arg1: i32, %arg2: i32, %arg3: memref<2xi32, #tpu.memory_space<smem>>) -> (i32, i32, i32) {
    %c1_i32 = arith.constant 1 : i32
    %0 = arith.muli %arg1, %c1_i32 : i32
    %1 = arith.addi %0, %arg2 : i32
    %c0_i32 = arith.constant 0 : i32
    %c0_i32_0 = arith.constant 0 : i32
    return %arg0, %1, %c0_i32 : i32, i32, i32
  }
  func.func @transform_2(%arg0: i32, %arg1: i32, %arg2: i32, %arg3: memref<2xi32, #tpu.memory_space<smem>>) -> (i32, i32, i32, i32) {
    %c0_i32 = arith.constant 0 : i32
    %c0_i32_0 = arith.constant 0 : i32
    %c0_i32_1 = arith.constant 0 : i32
    return %arg0, %arg1, %c0_i32, %c0_i32_0 : i32, i32, i32, i32
  }
}

</mosaic_0001>

<llo_original>
// kernel: tpu_custom_call.1
$region0: #{tpu_custom_call.1}
  #allocation0 [shape = 'u32[]', space=smem, size = 0x4, offset = 0x4, fixed_abs, tag = 'smem constant byte address 0x4 - core index']
  #allocation1 [shape = 'u32[144,128]{1,0:T(1,128)}', space=vmem, size = 0x12000, scoped, tag = 'internal scratch']
  #allocation2 [shape = 's32[1]{0}', space=sflag, size = 0x4, scoped, tag = 'scoped memory for tpu_custom_call.1']
  #allocation3 [shape = 'u8[512]{0}', space=smem, size = 0x200, scoped, tag = 'prefetched SMEM operand 0']
  %s0 = inlined_call_operand.vmem [shape: s32[2], index: 0, kind: input, shape index: {}]
  %s1 = inlined_call_operand.vmem [shape: f32[2,8,1], index: 1, kind: input, shape index: {}]
  %s2 = inlined_call_operand.vmem [shape: f32[2,8,32], index: 2, kind: input, shape index: {}]
  %s3 = inlined_call_operand.hbm [shape: f32[2,1,2,32], index: 3, kind: output, shape index: {}]
  %s4 = sld [smem:[#allocation0]]
  $region49: #{tpu_custom_call.1} parent=0
    _
  %s6 = ssub.s32 1, %s4
  %s7 = scalar_select 0, %s6, %s4
  %s8 = sshll.u32 %s0, 4
  %s9 = int_to_ptr.vmem [resolvable:$true] %s8
  %11 = dma.vmem_to_smem %s9, 16, [#allocation3], [#allocation2]
  %12 = dma.done [#allocation2], 16
  %13 = sfence
  $region1: #{tpu_custom_call.1} parent=0
    #allocation4 [shape = 'u8[2048]{0}', space=vmem, size = 0x800, scoped, tag = 'output window, operand 0']
    #allocation5 [shape = 's32[2]{0}', space=sflag, size = 0x8, scoped, tag = 'scoped memory for tpu_custom_call.1']
    %14 = vsyncpa [#allocation5], 0
    %s15 = scalar_lea.sflag [#allocation5], 1
    %16 = vsyncpa %s15, 0
    loop: start=0, step=1, limit=4
    $region2: #{tpu_custom_call.1} parent=1 // loop_pre_header
      _
    $region3: #{tpu_custom_call.1} parent=1 // loop_header
      %s18 = sphi 0, %s22
      %p19 = scmp.ge.s32.totalorder %s18, 4
      %s25 = sphi 0, %s44
      %s26 = sphi 0, %s40
      %s27 = sphi 0, %s36
      %s28 = sphi 0, %s25
      %s29 = sphi 0, %s26
      %s30 = sphi 0, %s27
      %s31 = sphi 0, %s28
      %s32 = sphi 0, %s29
      %s33 = sphi 0, %s30
      %s51 = sphi 0, %s53
      %s54 = sphi 0, %s51
      %s55 = sphi 0, %s54
      %s71 = sphi 0, %s55
      %s81 = sphi 0, %s83
      %s84 = sphi 0, %s81
      %s85 = sphi 0, %s84
      %s101 = sphi 0, %s85
      %s109 = sphi 0, %s111
      %s112 = sphi 0, %s109
      %s113 = sphi 0, %s112
      %s129 = sphi 0, %s113
    $region4: #{tpu_custom_call.1} parent=1 // loop_header_branch
      %21 = sbr.rel (%p19) target = $region8
    $region5: #{tpu_custom_call.1} parent=1 // loop_body
      %s23 = ssub.s32 %s18, 1
      %s24 = ssub.s32 %s18, 2
      %s34 = sadd.s32 1, %s27
      %p35 = scmp.ge.s32.totalorder %s34, 1
      %s36 = scalar_select %p35, 0, %s34
      %s37 = sadd.s32 1, %s26
      %s38 = scalar_select %p35, %s37, %s26
      %p39 = scmp.ge.s32.totalorder %s38, 1
      %s40 = scalar_select %p39, 0, %s38
      %s41 = sadd.s32 1, %s25
      %s42 = scalar_select %p39, %s41, %s25
      %p43 = scmp.ge.s32.totalorder %s42, 2
      %s44 = scalar_select %p43, 0, %s42
      %s45 = sadd.s32 %s26, %s27
      %s46 = sadd.s32 %s40, %s36
      %s47 = ssub.s32 %s25, %s44
      %s48 = ssub.s32 %s45, %s46
      %s49 = sor.u32 %s47, %s48
      %p50 = scmp.eq.s32.totalorder %s49, 0
      %s52 = sadd.s32 %s51, 1
      %s53 = scalar_select %p50, %s51, %s52
      %p56 = pneg %p50
      %p57 = scmp.eq.s32.totalorder %s18, 1
      %p58 = por %p56, %p57
      %p59 = scmp.ne.s32.totalorder %s51, %s54
      %p60 = scmp.eq.s32.totalorder %s18, 0
      %p61 = por %p59, %p60
      %p62 = scmp.ne.s32.totalorder %s51, %s54
      %p63 = scmp.eq.s32.totalorder %s23, 1
      %p64 = por %p62, %p63
      %p65 = scmp.ne.s32.totalorder %s54, %s55
      %p66 = scmp.eq.s32.totalorder %s23, 0
      %p67 = por %p65, %p66
      %p68 = scmp.ne.s32.totalorder %s54, %s55
      %p69 = scmp.eq.s32.totalorder %s24, 1
      %p70 = por %p68, %p69
      %p72 = scmp.ne.s32.totalorder %s55, %s71
      %p73 = scmp.eq.s32.totalorder %s24, 0
      %p74 = por %p72, %p73
      %s75 = sadd.s32 %s26, %s27
      %s76 = sadd.s32 %s40, %s36
      %s77 = ssub.s32 %s25, %s44
      %s78 = ssub.s32 %s75, %s76
      %s79 = sor.u32 %s77, %s78
      %p80 = scmp.eq.s32.totalorder %s79, 0
      %s82 = sadd.s32 %s81, 1
      %s83 = scalar_select %p80, %s81, %s82
      %p86 = pneg %p80
      %p87 = scmp.eq.s32.totalorder %s18, 1
      %p88 = por %p86, %p87
      %p89 = scmp.ne.s32.totalorder %s81, %s84
      %p90 = scmp.eq.s32.totalorder %s18, 0
      %p91 = por %p89, %p90
      %p92 = scmp.ne.s32.totalorder %s81, %s84
      %p93 = scmp.eq.s32.totalorder %s23, 1
      %p94 = por %p92, %p93
      %p95 = scmp.ne.s32.totalorder %s84, %s85
      %p96 = scmp.eq.s32.totalorder %s23, 0
      %p97 = por %p95, %p96
      %p98 = scmp.ne.s32.totalorder %s84, %s85
      %p99 = scmp.eq.s32.totalorder %s24, 1
      %p100 = por %p98, %p99
      %p102 = scmp.ne.s32.totalorder %s85, %s101
      %p103 = scmp.eq.s32.totalorder %s24, 0
      %p104 = por %p102, %p103
      %s105 = ssub.s32 %s25, %s44
      %s106 = ssub.s32 %s26, %s40
      %s107 = sor.u32 %s105, %s106
      %p108 = scmp.eq.s32.totalorder %s107, 0
      %s110 = sadd.s32 %s109, 1
      %s111 = scalar_select %p108, %s109, %s110
      %p114 = pneg %p108
      %p115 = scmp.eq.s32.totalorder %s18, 1
      %p116 = por %p114, %p115
      %p117 = scmp.ne.s32.totalorder %s109, %s112
      %p118 = scmp.eq.s32.totalorder %s18, 0
      %p119 = por %p117, %p118
      %p120 = scmp.ne.s32.totalorder %s109, %s112
      %p121 = scmp.eq.s32.totalorder %s23, 1
      %p122 = por %p120, %p121
      %p123 = scmp.ne.s32.totalorder %s112, %s113
      %p124 = scmp.eq.s32.totalorder %s23, 0
      %p125 = por %p123, %p124
      %p126 = scmp.ne.s32.totalorder %s112, %s113
      %p127 = scmp.eq.s32.totalorder %s24, 1
      %p128 = por %p126, %p127
      %p130 = scmp.ne.s32.totalorder %s113, %s129
      %p131 = scmp.eq.s32.totalorder %s24, 0
      %p132 = por %p130, %p131
      %p133 = scmp.le.s32.totalorder 1, %s18
      %p134 = scmp.lt.s32.totalorder %s18, 3
      %p135 = pnand %p133, %p134
      %p136 = pneg %p135
      // Predicated region
      $region9: #{tpu_custom_call.1} parent=5 // pred_check
        _
      $region10: #{tpu_custom_call.1} parent=5 // pred_check_branch
        %138 = sbr.rel (%p135) target = $region12
      $region11: #{tpu_custom_call.1} parent=5 // pred_region
        %s139 = ssub.s32 %s18, 1
      $region12: #{tpu_custom_call.1} parent=5 // pred_fallthru
        _
      %p140 = scmp.lt.s32.totalorder %s18, 2
      // Predicated region
      $region13: #{tpu_custom_call.1} parent=5 // pred_check
        %p141 = pneg %p140
      $region14: #{tpu_custom_call.1} parent=5 // pred_check_branch
        %143 = sbr.rel (%p141) target = $region16
      $region15: #{tpu_custom_call.1} parent=5 // pred_region
        // Predicated region
        $region17: #{tpu_custom_call.1} parent=15 // pred_check
          %p144 = pneg %p61
        $region18: #{tpu_custom_call.1} parent=15 // pred_check_branch
          %146 = sbr.rel (%p144) target = $region20
        $region19: #{tpu_custom_call.1} parent=15 // pred_region
          %s147 = sadd.s32 %s26, %s27
          %p148 = scmp.lt.s32.totalorder %s25, 1
          %s149 = scalar_select %p148, %s25, 1
          %p150 = scmp.lt.s32.totalorder %s147, 0
          %s151 = scalar_select %p150, %s147, 0
          %s152 = sadd.s32 %s151, %s149
          %s153 = smul.addr %s152, 8
          %s154 = scalar_lea.vmem %s1, %s153
          %s155 = sadd.s32 %s26, %s27
        $region20: #{tpu_custom_call.1} parent=15 // pred_fallthru
          _
        // Predicated region
        $region21: #{tpu_custom_call.1} parent=15 // pred_check
          %p156 = pneg %p91
        $region22: #{tpu_custom_call.1} parent=15 // pred_check_branch
          %158 = sbr.rel (%p156) target = $region24
        $region23: #{tpu_custom_call.1} parent=15 // pred_region
          %s159 = sadd.s32 %s26, %s27
          %p160 = scmp.lt.s32.totalorder %s25, 1
          %s161 = scalar_select %p160, %s25, 1
          %p162 = scmp.lt.s32.totalorder %s159, 0
          %s163 = scalar_select %p162, %s159, 0
          %s164 = sadd.s32 %s163, %s161
          %s165 = smul.addr %s164, 8
          %s166 = scalar_lea.vmem %s2, %s165
          %s167 = sadd.s32 %s26, %s27
        $region24: #{tpu_custom_call.1} parent=15 // pred_fallthru
          _
      $region16: #{tpu_custom_call.1} parent=5 // pred_fallthru
        _
      %p168 = scmp.le.s32.totalorder 1, %s18
      %p169 = scmp.lt.s32.totalorder %s18, 3
      %p170 = pnand %p168, %p169
      %p171 = pneg %p170
      // Predicated region
      $region25: #{tpu_custom_call.1} parent=5 // pred_check
        _
      $region26: #{tpu_custom_call.1} parent=5 // pred_check_branch
        %173 = sbr.rel (%p170) target = $region28
      $region27: #{tpu_custom_call.1} parent=5 // pred_region
        %s174 = ssub.s32 %s18, 1
        %s175 = sadd.s32 %s29, %s30
        %p176 = scmp.lt.s32.totalorder %s28, 1
        %s177 = scalar_select %p176, %s28, 1
        %p178 = scmp.lt.s32.totalorder %s175, 0
        %s179 = scalar_select %p178, %s175, 0
        %s180 = sadd.s32 %s179, %s177
        %s181 = smul.addr %s180, 8
        %s182 = scalar_lea.vmem %s1, %s181
        %p183 = pneg %p67
        %p184 = pneg %p64
        %s185 = sadd.s32 %s29, %s30
        %p186 = scmp.lt.s32.totalorder %s28, 1
        %s187 = scalar_select %p186, %s28, 1
        %p188 = scmp.lt.s32.totalorder %s185, 0
        %s189 = scalar_select %p188, %s185, 0
        %s190 = sadd.s32 %s189, %s187
        %s191 = smul.addr %s190, 8
        %s192 = scalar_lea.vmem %s2, %s191
        %p193 = pneg %p97
        %p194 = pneg %p94
        %p195 = pneg %p125
        %p196 = pneg %p122
        %s197 = sand.u32 %s112, 1
        %s198 = scalar_lea.sflag [#allocation5], %s197
        %s199 = sand.u32 %s112, 1
        %s200 = smul.addr %s199, 2
        %s201 = scalar_lea.vmem [#allocation4], %s200
        %s202 = sadd.s32 %s29, %s30
        %p203 = scmp.lt.s32.totalorder %s28, 1
        %s204 = scalar_select %p203, %s28, 1
        %p205 = scmp.lt.s32.totalorder %s202, 0
        %s206 = scalar_select %p205, %s202, 0
        %s207 = sadd.s32 %s206, %s204
        %s208 = smul.addr %s207, 8
        %s209 = scalar_lea.vmem %s1, %s208
        %s210 = sadd.s32 %s29, %s30
        %s211 = sadd.s32 %s29, %s30
        %p212 = scmp.lt.s32.totalorder %s28, 1
        %s213 = scalar_select %p212, %s28, 1
        %p214 = scmp.lt.s32.totalorder %s211, 0
        %s215 = scalar_select %p214, %s211, 0
        %s216 = sadd.s32 %s215, %s213
        %s217 = smul.addr %s216, 8
        %s218 = scalar_lea.vmem %s2, %s217
        %s219 = sadd.s32 %s29, %s30
        %p220 = scmp.eq.s32.totalorder %s30, 0
        // Predicated region
        $region29: #{tpu_custom_call.1} parent=27 // pred_check
          %p221 = pneg %p220
        $region30: #{tpu_custom_call.1} parent=27 // pred_check_branch
          %223 = sbr.rel (%p221) target = $region32
        $region31: #{tpu_custom_call.1} parent=27 // pred_region
          %vm224 = vcmask 254976
          %225 = vst.msk [vmem:[%s201] sm:$0x3] %vm224, 0.0
        $region32: #{tpu_custom_call.1} parent=27 // pred_fallthru
          _
        %v226 = vld [vmem:[%s218] sm:$0xff]
        %v227 = vld [vmem:[%s209] sm:$0xff]
        %229 = vset.pattern.permute.xlu0 0
        %230 = vperm.xlu0 %229, %v227
        %v231 = vpop.permute.xlu0 %230
        %v233 = vmul.f32 %v226, %v231
        %v234 = vld [vmem:[%s201] sm:$0x1]
        %vm235 = vcmask 261120
        %v236 = vsel %vm235, %v233, 0.0
        %v237 = vrot.slane %v236, 4
        %v238 = vadd.f32 %v236, %v237
        %v239 = vrot.slane %v238, 2
        %v240 = vadd.f32 %v238, %v239
        %v241 = vrot.slane %v240, 1
        %v242 = vadd.f32 %v240, %v241
        %v243 = vadd.f32 %v234, %v242
        %vm244 = vcmask 253952
        %245 = vst.msk [vmem:[%s201] sm:$0x1] %vm244, %v243
        %s246 = sld [smem:[#allocation3 + %s28]]
        %s247 = sadd.s32 %s29, %s30
        %s248 = smul.u32 %s247, 8
        %s249 = ssub.s32 %s246, %s248
        %p250 = scmp.ge.s32.totalorder %s249, 0
        %p251 = scmp.lt.s32.totalorder %s249, 8
        %p252 = pnand %p250, %p251
        %p253 = pneg %p252
        // Predicated region
        $region33: #{tpu_custom_call.1} parent=27 // pred_check
          _
        $region34: #{tpu_custom_call.1} parent=27 // pred_check_branch
          %255 = sbr.rel (%p252) target = $region36
        $region35: #{tpu_custom_call.1} parent=27 // pred_region
          %s256 = scalar_lea.vmem %s218, %s249
          %v257 = vld [vmem:[%s256] sm:$0x1]
          %258 = vst.msk [vmem:[%s201 + $0x1] sm:$0x1] %vm244, %v257
        $region36: #{tpu_custom_call.1} parent=27 // pred_fallthru
          _
        %s259 = sand.u32 %s112, 1
        %s260 = scalar_lea.sflag [#allocation5], %s259
        %s261 = sand.u32 %s112, 1
        %s262 = smul.addr %s261, 2
        %s263 = scalar_lea.vmem [#allocation4], %s262
        // Predicated region
        $region37: #{tpu_custom_call.1} parent=27 // pred_check
          %p264 = pneg %p122
        $region38: #{tpu_custom_call.1} parent=27 // pred_check_branch
          %266 = sbr.rel (%p264) target = $region40
        $region39: #{tpu_custom_call.1} parent=27 // pred_region
          %s268 = ssub.s32 32, 32
          %269 = vsyncadd %s260, %s268
          %s270 = sadd.s32 %s29, %s28
          %s271 = smul.addr %s270, 32
          %s272 = scalar_lea.hbm %s3, %s271
          %s274 = sshll.u32 %s263, 4
          %s275 = int_to_ptr.vmem [resolvable:$true] %s274
          %277 = dma.vmem_to_hbm [thread:$0]  %s275, 32, %s272, %s260
        $region40: #{tpu_custom_call.1} parent=27 // pred_fallthru
          _
      $region28: #{tpu_custom_call.1} parent=5 // pred_fallthru
        _
      %p278 = scmp.le.s32.totalorder 2, %s18
      // Predicated region
      $region41: #{tpu_custom_call.1} parent=5 // pred_check
        %p279 = pneg %p278
      $region42: #{tpu_custom_call.1} parent=5 // pred_check_branch
        %281 = sbr.rel (%p279) target = $region44
      $region43: #{tpu_custom_call.1} parent=5 // pred_region
        %s282 = ssub.s32 %s18, 2
        // Predicated region
        $region45: #{tpu_custom_call.1} parent=43 // pred_check
          %p283 = pneg %p128
        $region46: #{tpu_custom_call.1} parent=43 // pred_check_branch
          %285 = sbr.rel (%p283) target = $region48
        $region47: #{tpu_custom_call.1} parent=43 // pred_region
          %s286 = sand.u32 %s113, 1
          %s287 = scalar_lea.sflag [#allocation5], %s286
          %s288 = sand.u32 %s113, 1
          %s289 = smul.addr %s288, 2
          %s290 = scalar_lea.vmem [#allocation4], %s289
          %291 = dma.done %s287, 32
        $region48: #{tpu_custom_call.1} parent=43 // pred_fallthru
          _
      $region44: #{tpu_custom_call.1} parent=5 // pred_fallthru
        _
    $region6: #{tpu_custom_call.1} parent=1 // loop_footer
      %s22 = sadd.s32 1, %s18
    $region7: #{tpu_custom_call.1} parent=1 // loop_footer_branch
      %17 = sbr.rel target = $region3
    $region8: #{tpu_custom_call.1} parent=1 // loop_exit
      _
    %292 = vsyncpa [#allocation5], 1
    %s293 = scalar_lea.sflag [#allocation5], 1
    %294 = vsyncpa %s293, 1

</llo_original>
